<compile_context>
chip_gen: v7x
topology: tpu7x:2x2x1
jax: 0.10.0
libtpu: 0.0.40
codegen_flags: <defaults>
</compile_context>

<pallas_src>
import numpy as np
import jax
import jax.numpy as jnp
from jax.experimental import pallas as pl
from jax.experimental.pallas import tpu as pltpu


def _pbs_kernel(q_ref, cos_ref, sin_ref, out_ref):
    n_pad = q_ref.shape[0]          # padded number of Bernoulli factors (pow2)
    n1 = cos_ref.shape[0]           # n + 1 DFT bins

    q = q_ref[...]                  # (n_pad, 1)
    # Roots of unity are row 1 of the (unscaled) DFT twiddle matrices:
    #   cos_mat[1, l] = cos(2*pi*l/n1),  sin_mat[1, l] = sin(2*pi*l/n1)
    rr = cos_ref[1:2, :]            # (1, n1) real part of roots
    ri = sin_ref[1:2, :]            # (1, n1) imag part of roots

    # z[j, l] = 1 + q[j] * (root[l] - 1)
    zr = rr * q - q + 1.0           # (n_pad, n1)
    zi = ri * q                     # (n_pad, n1)

    # Product over the factors, split (as in the reference torch_complex_prod)
    # into a log-magnitude sum and a unit-modulus phase product.
    # Clamp r2 away from 0 so q_j == 0.5 at root -1 (z == 0) does not produce
    # log(0)/rsqrt(0) NaNs; the unit phase becomes exactly 0 for that bin and
    # the final result is (numerically) 0, matching the exact-zero reference.
    r2 = jnp.maximum(zr * zr + zi * zi, jnp.float32(1e-30))
    log_mag_sum = jnp.sum(0.5 * jnp.log(r2), axis=0, keepdims=True)   # (1, n1)

    inv_r = jax.lax.rsqrt(r2)
    pr = zr * inv_r                 # unit-modulus real part, (n_pad, n1)
    pq = zi * inv_r                 # unit-modulus imag part, (n_pad, n1)

    # log2(n_pad)-step pairwise tree reduction of the complex phase product
    # (full-vreg elementwise multiplies; no per-row serial chain).
    rows = n_pad
    while rows > 1:
        half = rows // 2
        ar, ai = pr[:half, :], pq[:half, :]
        br, bi = pr[half:rows, :], pq[half:rows, :]
        pr = ar * br - ai * bi
        pq = ar * bi + ai * br
        rows = half
    # pr, pq: (1, n1)

    # Fold the 1/(n+1) DFT normalization into the magnitude term.
    mag = jnp.exp(log_mag_sum) * jnp.float32(1.0 / n1)                # (1, n1)
    x_real = mag * pr
    x_imag = mag * pq

    # Forward DFT, real part only (matches real(fft(x)) since fft uses e^{-i t}):
    #   pb[k] = sum_l xr[l]*cos(2*pi*l*k/n1) + xi[l]*sin(2*pi*l*k/n1)
    # Done on the MXU as row-vector matmuls -> lane-dense (1, n1) output.
    out_ref[...] = (
        jnp.dot(x_real, cos_ref[...], preferred_element_type=jnp.float32)
        + jnp.dot(x_imag, sin_ref[...], preferred_element_type=jnp.float32)
    )


def poisson_binomial_sum(q):
    """q: (n,) array of Bernoulli probabilities -> (n+1,) pmf of their sum."""
    n = q.shape[0]
    n1 = n + 1
    # Pad the factor axis to a power of two (>= 8 sublanes) with q = 0, which
    # is the exact identity factor (z = 1) for every DFT bin.
    n_pad = max(8, int(pl.next_power_of_2(n)))

    # DFT twiddle matrices (module "buffers"), built in float64 then cast.
    w = 2.0 * np.pi / n1
    l = np.arange(n1, dtype=np.float64)
    ang = w * np.outer(l, l)
    cos_mat = jnp.asarray(np.cos(ang), jnp.float32)   # (n1, n1)
    sin_mat = jnp.asarray(np.sin(ang), jnp.float32)   # (n1, n1)

    q_col = jnp.pad(q.astype(jnp.float32), (0, n_pad - n)).reshape(n_pad, 1)

    vmem = pl.BlockSpec(memory_space=pltpu.MemorySpace.VMEM)
    out = pl.pallas_call(
        _pbs_kernel,
        out_shape=jax.ShapeDtypeStruct((1, n1), jnp.float32),
        in_specs=[vmem, vmem, vmem],
        out_specs=vmem,
    )(q_col, cos_mat, sin_mat)
    return out.reshape(n1)


if __name__ == "__main__":
    n = 8
    key = jax.random.PRNGKey(0)
    q = jax.random.uniform(key, (n,), jnp.float32, minval=0.05, maxval=0.95)

    pb = poisson_binomial_sum(q)
    pb = jax.block_until_ready(pb)

    # Pure-JAX reference reproducing the PyTorch forward semantics.
    qc = q.astype(jnp.complex64)
    ls = jnp.arange(n + 1)
    roots = jnp.exp(2j * jnp.pi * ls / (n + 1)).astype(jnp.complex64)
    z = roots[:, None] * qc[None, :] - qc[None, :] + 1.0
    x = jnp.prod(z, axis=1)
    ref = jnp.real(jnp.fft.fft(x)) / (n + 1)

    assert pb.shape == (n + 1,)
    assert jnp.allclose(pb, ref, atol=1e-4), (pb, ref)
    print("KERNEL_OK")
</pallas_src>

<mosaic_0001>
module attributes {stable_mosaic.version = 11 : i64} {
  func.func @_pbs_kernel(%arg0: memref<8x1xf32, #tpu.memory_space<vmem>>, %arg1: memref<9x9xf32, #tpu.memory_space<vmem>>, %arg2: memref<9x9xf32, #tpu.memory_space<vmem>>, %arg3: memref<1x9xf32, #tpu.memory_space<vmem>>) attributes {dimension_semantics = [], scalar_prefetch = 0 : i64, scratch_operands = 0 : i64, tpu.core_type = #tpu.core_type<tc>} {
    %c0 = arith.constant 0 : index
    %c0_0 = arith.constant 0 : index
    %0 = vector.load %arg0[%c0, %c0_0] : memref<8x1xf32, #tpu.memory_space<vmem>>, vector<8x1xf32>
    %c1 = arith.constant 1 : index
    %c0_1 = arith.constant 0 : index
    %1 = vector.load %arg1[%c1, %c0_1] : memref<9x9xf32, #tpu.memory_space<vmem>>, vector<1x9xf32>
    %c1_2 = arith.constant 1 : index
    %c0_3 = arith.constant 0 : index
    %2 = vector.load %arg2[%c1_2, %c0_3] : memref<9x9xf32, #tpu.memory_space<vmem>>, vector<1x9xf32>
    %3 = vector.broadcast %1 : vector<1x9xf32> to vector<8x9xf32>
    %4 = vector.broadcast %0 : vector<8x1xf32> to vector<8x9xf32>
    %5 = arith.mulf %3, %4 : vector<8x9xf32>
    %6 = vector.broadcast %0 : vector<8x1xf32> to vector<8x9xf32>
    %7 = arith.subf %5, %6 : vector<8x9xf32>
    %cst = arith.constant 1.000000e+00 : f32
    %8 = vector.broadcast %cst : f32 to vector<8x9xf32>
    %9 = arith.addf %7, %8 : vector<8x9xf32>
    %10 = vector.broadcast %2 : vector<1x9xf32> to vector<8x9xf32>
    %11 = vector.broadcast %0 : vector<8x1xf32> to vector<8x9xf32>
    %12 = arith.mulf %10, %11 : vector<8x9xf32>
    %13 = arith.mulf %9, %9 : vector<8x9xf32>
    %14 = arith.mulf %12, %12 : vector<8x9xf32>
    %15 = arith.addf %13, %14 : vector<8x9xf32>
    %cst_4 = arith.constant 1.000000e-30 : f32
    %16 = vector.broadcast %cst_4 : f32 to vector<8x9xf32>
    %17 = arith.maximumf %15, %16 : vector<8x9xf32>
    %18 = math.log %17 : vector<8x9xf32>
    %cst_5 = arith.constant 5.000000e-01 : f32
    %19 = vector.broadcast %cst_5 : f32 to vector<8x9xf32>
    %20 = arith.mulf %19, %18 : vector<8x9xf32>
    %cst_6 = arith.constant dense<0.000000e+00> : vector<9xf32>
    %21 = vector.multi_reduction <add>, %20, %cst_6 [0] : vector<8x9xf32> to vector<9xf32>
    %22 = vector.shape_cast %21 : vector<9xf32> to vector<1x9xf32>
    %23 = math.rsqrt %17 : vector<8x9xf32>
    %24 = arith.mulf %9, %23 : vector<8x9xf32>
    %25 = arith.mulf %12, %23 : vector<8x9xf32>
    %26 = vector.extract_strided_slice %24 {offsets = [0, 0], sizes = [4, 9], strides = [1, 1]} : vector<8x9xf32> to vector<4x9xf32>
    %27 = vector.extract_strided_slice %25 {offsets = [0, 0], sizes = [4, 9], strides = [1, 1]} : vector<8x9xf32> to vector<4x9xf32>
    %28 = vector.extract_strided_slice %24 {offsets = [4, 0], sizes = [4, 9], strides = [1, 1]} : vector<8x9xf32> to vector<4x9xf32>
    %29 = vector.extract_strided_slice %25 {offsets = [4, 0], sizes = [4, 9], strides = [1, 1]} : vector<8x9xf32> to vector<4x9xf32>
    %30 = arith.mulf %26, %28 : vector<4x9xf32>
    %31 = arith.mulf %27, %29 : vector<4x9xf32>
    %32 = arith.subf %30, %31 : vector<4x9xf32>
    %33 = arith.mulf %26, %29 : vector<4x9xf32>
    %34 = arith.mulf %27, %28 : vector<4x9xf32>
    %35 = arith.addf %33, %34 : vector<4x9xf32>
    %36 = vector.extract_strided_slice %32 {offsets = [0, 0], sizes = [2, 9], strides = [1, 1]} : vector<4x9xf32> to vector<2x9xf32>
    %37 = vector.extract_strided_slice %35 {offsets = [0, 0], sizes = [2, 9], strides = [1, 1]} : vector<4x9xf32> to vector<2x9xf32>
    %38 = vector.extract_strided_slice %32 {offsets = [2, 0], sizes = [2, 9], strides = [1, 1]} : vector<4x9xf32> to vector<2x9xf32>
    %39 = vector.extract_strided_slice %35 {offsets = [2, 0], sizes = [2, 9], strides = [1, 1]} : vector<4x9xf32> to vector<2x9xf32>
    %40 = arith.mulf %36, %38 : vector<2x9xf32>
    %41 = arith.mulf %37, %39 : vector<2x9xf32>
    %42 = arith.subf %40, %41 : vector<2x9xf32>
    %43 = arith.mulf %36, %39 : vector<2x9xf32>
    %44 = arith.mulf %37, %38 : vector<2x9xf32>
    %45 = arith.addf %43, %44 : vector<2x9xf32>
    %46 = vector.extract_strided_slice %42 {offsets = [0, 0], sizes = [1, 9], strides = [1, 1]} : vector<2x9xf32> to vector<1x9xf32>
    %47 = vector.extract_strided_slice %45 {offsets = [0, 0], sizes = [1, 9], strides = [1, 1]} : vector<2x9xf32> to vector<1x9xf32>
    %48 = vector.extract_strided_slice %42 {offsets = [1, 0], sizes = [1, 9], strides = [1, 1]} : vector<2x9xf32> to vector<1x9xf32>
    %49 = vector.extract_strided_slice %45 {offsets = [1, 0], sizes = [1, 9], strides = [1, 1]} : vector<2x9xf32> to vector<1x9xf32>
    %50 = arith.mulf %46, %48 : vector<1x9xf32>
    %51 = arith.mulf %47, %49 : vector<1x9xf32>
    %52 = arith.subf %50, %51 : vector<1x9xf32>
    %53 = arith.mulf %46, %49 : vector<1x9xf32>
    %54 = arith.mulf %47, %48 : vector<1x9xf32>
    %55 = arith.addf %53, %54 : vector<1x9xf32>
    %56 = math.exp %22 : vector<1x9xf32>
    %cst_7 = arith.constant 0.111111112 : f32
    %57 = vector.broadcast %cst_7 : f32 to vector<1x9xf32>
    %58 = arith.mulf %56, %57 : vector<1x9xf32>
    %59 = arith.mulf %58, %52 : vector<1x9xf32>
    %60 = arith.mulf %58, %55 : vector<1x9xf32>
    %c0_8 = arith.constant 0 : index
    %c0_9 = arith.constant 0 : index
    %61 = vector.load %arg1[%c0_8, %c0_9] : memref<9x9xf32, #tpu.memory_space<vmem>>, vector<9x9xf32>
    %cst_10 = arith.constant dense<0.000000e+00> : vector<1x9xf32>
    %62 = tpu.matmul %59, %61, %cst_10 {dimension_numbers = #tpu.dot_dimension_numbers<[1], [0], [0], [1], [0, 0, 1, 1], [], []>} : vector<1x9xf32>, vector<9x9xf32>, vector<1x9xf32> -> vector<1x9xf32>
    %c0_11 = arith.constant 0 : index
    %c0_12 = arith.constant 0 : index
    %63 = vector.load %arg2[%c0_11, %c0_12] : memref<9x9xf32, #tpu.memory_space<vmem>>, vector<9x9xf32>
    %cst_13 = arith.constant dense<0.000000e+00> : vector<1x9xf32>
    %64 = tpu.matmul %60, %63, %cst_13 {dimension_numbers = #tpu.dot_dimension_numbers<[1], [0], [0], [1], [0, 0, 1, 1], [], []>} : vector<1x9xf32>, vector<9x9xf32>, vector<1x9xf32> -> vector<1x9xf32>
    %65 = arith.addf %62, %64 : vector<1x9xf32>
    %c0_14 = arith.constant 0 : index
    %c0_15 = arith.constant 0 : index
    %66 = vector.load %arg3[%c0_14, %c0_15] : memref<1x9xf32, #tpu.memory_space<vmem>>, vector<1x9xf32>
    tpu.vector_store %arg3[%c0_14, %c0_15], %65 {strides = array<i32>} : memref<1x9xf32, #tpu.memory_space<vmem>>, vector<1x9xf32>,
    return
  }
}

</mosaic_0001>

<llo_original>
// kernel: tpu_custom_call.1
$region0: #{tpu_custom_call.1}
  #allocation0 [shape = 'u32[]', space=smem, size = 0x4, offset = 0x4, fixed_abs, tag = 'smem constant byte address 0x4 - core index']
  #allocation1 [shape = 'u32[144,128]{1,0:T(1,128)}', space=vmem, size = 0x12000, scoped, tag = 'internal scratch']
  %s0 = inlined_call_operand.vmem [shape: f32[8,1], index: 0, kind: input, shape index: {}]
  %s1 = inlined_call_operand.hbm [shape: f32[9,9], index: 1, kind: input, shape index: {}]
  %s2 = inlined_call_operand.vmem [shape: f32[9,9], index: 2, kind: input, shape index: {}]
  %s3 = inlined_call_operand.hbm [shape: f32[1,9], index: 3, kind: output, shape index: {}]
  %s4 = sld [smem:[#allocation0]]
  $region26: #{tpu_custom_call.1} parent=0
    _
  %s6 = ssub.s32 1, %s4
  %s7 = scalar_select 0, %s6, %s4
  $region1: #{tpu_custom_call.1} parent=0
    #allocation2 [shape = 'u8[8192]{0}', space=vmem, size = 0x2000, scoped, tag = 'input window, operand 1, single buffered']
    #allocation3 [shape = 's32[1]{0}', space=sflag, size = 0x4, scoped, tag = 'scoped memory for tpu_custom_call.1']
    #allocation4 [shape = 's32[1]{0}', space=sflag, size = 0x4, scoped, tag = 'scoped memory for tpu_custom_call.1']
    #allocation5 [shape = 'u8[512]{0}', space=vmem, size = 0x400, scoped, tag = 'output window, operand 0, single buffered']
    %8 = vsyncpa [#allocation3], 0
    %9 = vsyncpa [#allocation4], 0
    // Predicated region
    $region2: #{tpu_custom_call.1} parent=1 // pred_check
      _
    $region3: #{tpu_custom_call.1} parent=1 // pred_check_branch
      %11 = sbr.rel (0) target = $region5
    $region4: #{tpu_custom_call.1} parent=1 // pred_region
      _
    $region5: #{tpu_custom_call.1} parent=1 // pred_fallthru
      _
    // Predicated region
    $region6: #{tpu_custom_call.1} parent=1 // pred_check
      _
    $region7: #{tpu_custom_call.1} parent=1 // pred_check_branch
      %13 = sbr.rel (0) target = $region9
    $region8: #{tpu_custom_call.1} parent=1 // pred_region
      %s15 = ssub.s32 256, 256
      %16 = vsyncadd [#allocation3], %s15
      %s17 = sshll.u32 [#allocation2], 4
      %s18 = int_to_ptr.vmem [resolvable:$true] %s17
      %23 = dma.hbm_to_vmem [thread:$0]  %s1, 256, %s18, [#allocation3], 128, 128, 8
    $region9: #{tpu_custom_call.1} parent=1 // pred_fallthru
      _
    // Predicated region
    $region10: #{tpu_custom_call.1} parent=1 // pred_check
      _
    $region11: #{tpu_custom_call.1} parent=1 // pred_check_branch
      %25 = sbr.rel (0) target = $region13
    $region12: #{tpu_custom_call.1} parent=1 // pred_region
      _
    $region13: #{tpu_custom_call.1} parent=1 // pred_fallthru
      _
    // Predicated region
    $region14: #{tpu_custom_call.1} parent=1 // pred_check
      _
    $region15: #{tpu_custom_call.1} parent=1 // pred_check_branch
      %27 = sbr.rel (0) target = $region17
    $region16: #{tpu_custom_call.1} parent=1 // pred_region
      %28 = dma.done [#allocation3], 256
    $region17: #{tpu_custom_call.1} parent=1 // pred_fallthru
      _
    %v29 = vld [vmem:[%s0] sm:$0xff]
    %v30 = vld [vmem:[#allocation2 + $0x1] sm:$0x1]
    %v31 = vld [vmem:[%s2 + $0x1] sm:$0x1]
    %v32 = vlaneseq
    %v33 = vshrl.u32 %v32, 7
    %v34 = vsub.s32 0, %v33
    %v35 = vrot.slane %v30, %v34
    %37 = vset.pattern.permute.xlu0 0
    %38 = vperm.xlu0 %37, %v29
    %v39 = vpop.permute.xlu0 %38
    %v41 = vmul.f32 %v35, %v39
    %v42 = vsub.f32 %v41, %v39
    %v43 = vadd.f32 %v42, 1.0
    %v44 = vlaneseq
    %v45 = vshrl.u32 %v44, 7
    %v46 = vsub.s32 0, %v45
    %v47 = vrot.slane %v31, %v46
    %v48 = vmul.f32 %v47, %v39
    %v49 = vmul.f32 %v43, %v43
    %v50 = vmul.f32 %v48, %v48
    %v51 = vadd.f32 %v49, %v50
    %v52 = vmax.f32 %v51, 1e-30
    %v53 = vlog2.pop %v52
    %v54 = vmul.f32 %v53, 0.6931472
    %v55 = vmul.f32 %v54, 0.5
    %vm56 = vcmask 72704
    %v57 = vsel %vm56, %v55, 0.0
    %v58 = vrot.slane %v57, 4
    %v59 = vadd.f32 %v57, %v58
    %v60 = vrot.slane %v59, 2
    %v61 = vadd.f32 %v59, %v60
    %v62 = vrot.slane %v61, 1
    %v63 = vadd.f32 %v61, %v62
    %v64 = vrsqrt.pop %v52
    %v65 = vmul.f32 %v43, %v64
    %v66 = vmul.f32 %v48, %v64
    %v68 = vrot.slane %v65, 4
    %v70 = vmul.f32 %v65, %v68
    %v72 = vrot.slane %v66, 4
    %v74 = vmul.f32 %v66, %v72
    %v75 = vsub.f32 %v70, %v74
    %v76 = vmul.f32 %v65, %v72
    %v77 = vmul.f32 %v66, %v68
    %v78 = vadd.f32 %v76, %v77
    %v80 = vrot.slane %v75, 2
    %v82 = vmul.f32 %v75, %v80
    %v84 = vrot.slane %v78, 2
    %v86 = vmul.f32 %v78, %v84
    %v87 = vsub.f32 %v82, %v86
    %v88 = vmul.f32 %v75, %v84
    %v89 = vmul.f32 %v78, %v80
    %v90 = vadd.f32 %v88, %v89
    %v92 = vrot.slane %v87, 1
    %v94 = vmul.f32 %v87, %v92
    %v96 = vrot.slane %v90, 1
    %v98 = vmul.f32 %v90, %v96
    %v99 = vsub.f32 %v94, %v98
    %v100 = vmul.f32 %v87, %v96
    %v101 = vmul.f32 %v90, %v92
    %v102 = vadd.f32 %v100, %v101
    %v103 = vmul.f32 %v63, 1.442695
    %v104 = vpow.pop %v103
    %v105 = vmul.f32 %v104, 0.11111111
    %v106 = vmul.f32 %v105, %v99
    %v107 = vmul.f32 %v105, %v102
    %v108 = vld [vmem:[#allocation2] sm:$0xff]
    %v109 = vld [vmem:[#allocation2 + $0x8] sm:$0x1]
    %v110 = vld [vmem:[%s2] sm:$0xff]
    %v111 = vld [vmem:[%s2 + $0x8] sm:$0x1]
    %v113 = vsel %vm56, %v107, 0
    %vm115 = vcmask 1040384
    %v117 = vsel %vm115, %v111, 0
    %119 = vmatprep.subr.mxu0 0.0
    %120 = vmatpush1.msra.mxu0 %v110
    %121 = vmatprep.subr.mxu0 0.0
    %122 = vmatpush1.msra.mxu0 %v117
    %123 = vmatprep.subr.mxu0 0.0
    %124 = vmatpush1.msra.mxu0 0.0
    %125 = vmatprep.subr.mxu0 0.0
    %126 = vmatpush1.msra.mxu0 0.0
    %127 = vmatprep.subr.mxu0 0.0
    %128 = vmatpush1.msra.mxu0 0.0
    %129 = vmatprep.subr.mxu0 0.0
    %130 = vmatpush1.msra.mxu0 0.0
    %131 = vmatprep.subr.mxu0 0.0
    %132 = vmatpush1.msra.mxu0 0.0
    %133 = vmatprep.subr.mxu0 0.0
    %134 = vmatpush1.msra.mxu0 0.0
    %135 = vmatprep.subr.mxu0 0.0
    %136 = vmatpush1.msra.mxu0 0.0
    %137 = vmatprep.subr.mxu0 0.0
    %138 = vmatpush1.msra.mxu0 0.0
    %139 = vmatprep.subr.mxu0 0.0
    %140 = vmatpush1.msra.mxu0 0.0
    %141 = vmatprep.subr.mxu0 0.0
    %142 = vmatpush1.msra.mxu0 0.0
    %143 = vmatprep.subr.mxu0 0.0
    %144 = vmatpush1.msra.mxu0 0.0
    %145 = vmatprep.subr.mxu0 0.0
    %146 = vmatpush1.msra.mxu0 0.0
    %147 = vmatprep.subr.mxu0 0.0
    %148 = vmatpush1.msra.mxu0 0.0
    %149 = vmatprep.subr.mxu0 0.0
    %150 = vmatpush1.msra.mxu0 0.0
    %151 = vmatprep.subr.mxu0 0.0
    %152 = vmatpush1.msra.mxu0 0.0
    %153 = vmatprep.subr.mxu0 0.0
    %154 = vmatpush1.msra.mxu0 0.0
    %155 = vmatprep.subr.mxu0 0.0
    %156 = vmatpush1.msra.mxu0 0.0
    %157 = vmatprep.subr.mxu0 0.0
    %158 = vmatpush1.msra.mxu0 0.0
    %159 = vmatprep.subr.mxu0 0.0
    %160 = vmatpush1.msra.mxu0 0.0
    %161 = vmatprep.subr.mxu0 0.0
    %162 = vmatpush1.msra.mxu0 0.0
    %163 = vmatprep.subr.mxu0 0.0
    %164 = vmatpush1.msra.mxu0 0.0
    %165 = vmatprep.subr.mxu0 0.0
    %166 = vmatpush1.msra.mxu0 0.0
    %167 = vmatprep.subr.mxu0 0.0
    %168 = vmatpush1.msra.mxu0 0.0
    %169 = vmatprep.subr.mxu0 0.0
    %170 = vmatpush1.msra.mxu0 0.0
    %171 = vmatprep.subr.mxu0 0.0
    %172 = vmatpush1.msra.mxu0 0.0
    %173 = vmatprep.subr.mxu0 0.0
    %174 = vmatpush1.msra.mxu0 0.0
    %175 = vmatprep.subr.mxu0 0.0
    %176 = vmatpush1.msra.mxu0 0.0
    %177 = vmatprep.subr.mxu0 0.0
    %178 = vmatpush1.msra.mxu0 0.0
    %179 = vmatprep.subr.mxu0 0.0
    %180 = vmatpush1.msra.mxu0 0.0
    %181 = vmatprep.subr.mxu0 0.0
    %182 = vmatpush1.msra.mxu0 0.0
    %183 = vmatprep.mubr.f32.mxu0 0.0
    %184 = vmatmul.mubr.f32.gmra.mrb[0].mxu0 %v113
    %v185 = vpop.f32.mrb[0].mxu0
    %v186 = vadd.f32 0.0, %v185
    %v187 = vpop.f32.mrb[0].mxu0
    %188 = vdwg.mxu0
    %v190 = vsel %vm56, %v106, 0
    %v193 = vsel %vm115, %v109, 0
    %195 = vmatprep.subr.mxu0 0.0
    %196 = vmatpush1.msra.mxu0 %v108
    %197 = vmatprep.subr.mxu0 0.0
    %198 = vmatpush1.msra.mxu0 %v193
    %199 = vmatprep.subr.mxu0 0.0
    %200 = vmatpush1.msra.mxu0 0.0
    %201 = vmatprep.subr.mxu0 0.0
    %202 = vmatpush1.msra.mxu0 0.0
    %203 = vmatprep.subr.mxu0 0.0
    %204 = vmatpush1.msra.mxu0 0.0
    %205 = vmatprep.subr.mxu0 0.0
    %206 = vmatpush1.msra.mxu0 0.0
    %207 = vmatprep.subr.mxu0 0.0
    %208 = vmatpush1.msra.mxu0 0.0
    %209 = vmatprep.subr.mxu0 0.0
    %210 = vmatpush1.msra.mxu0 0.0
    %211 = vmatprep.subr.mxu0 0.0
    %212 = vmatpush1.msra.mxu0 0.0
    %213 = vmatprep.subr.mxu0 0.0
    %214 = vmatpush1.msra.mxu0 0.0
    %215 = vmatprep.subr.mxu0 0.0
    %216 = vmatpush1.msra.mxu0 0.0
    %217 = vmatprep.subr.mxu0 0.0
    %218 = vmatpush1.msra.mxu0 0.0
    %219 = vmatprep.subr.mxu0 0.0
    %220 = vmatpush1.msra.mxu0 0.0
    %221 = vmatprep.subr.mxu0 0.0
    %222 = vmatpush1.msra.mxu0 0.0
    %223 = vmatprep.subr.mxu0 0.0
    %224 = vmatpush1.msra.mxu0 0.0
    %225 = vmatprep.subr.mxu0 0.0
    %226 = vmatpush1.msra.mxu0 0.0
    %227 = vmatprep.subr.mxu0 0.0
    %228 = vmatpush1.msra.mxu0 0.0
    %229 = vmatprep.subr.mxu0 0.0
    %230 = vmatpush1.msra.mxu0 0.0
    %231 = vmatprep.subr.mxu0 0.0
    %232 = vmatpush1.msra.mxu0 0.0
    %233 = vmatprep.subr.mxu0 0.0
    %234 = vmatpush1.msra.mxu0 0.0
    %235 = vmatprep.subr.mxu0 0.0
    %236 = vmatpush1.msra.mxu0 0.0
    %237 = vmatprep.subr.mxu0 0.0
    %238 = vmatpush1.msra.mxu0 0.0
    %239 = vmatprep.subr.mxu0 0.0
    %240 = vmatpush1.msra.mxu0 0.0
    %241 = vmatprep.subr.mxu0 0.0
    %242 = vmatpush1.msra.mxu0 0.0
    %243 = vmatprep.subr.mxu0 0.0
    %244 = vmatpush1.msra.mxu0 0.0
    %245 = vmatprep.subr.mxu0 0.0
    %246 = vmatpush1.msra.mxu0 0.0
    %247 = vmatprep.subr.mxu0 0.0
    %248 = vmatpush1.msra.mxu0 0.0
    %249 = vmatprep.subr.mxu0 0.0
    %250 = vmatpush1.msra.mxu0 0.0
    %251 = vmatprep.subr.mxu0 0.0
    %252 = vmatpush1.msra.mxu0 0.0
    %253 = vmatprep.subr.mxu0 0.0
    %254 = vmatpush1.msra.mxu0 0.0
    %255 = vmatprep.subr.mxu0 0.0
    %256 = vmatpush1.msra.mxu0 0.0
    %257 = vmatprep.subr.mxu0 0.0
    %258 = vmatpush1.msra.mxu0 0.0
    %259 = vmatprep.mubr.f32.mxu0 0.0
    %260 = vmatmul.mubr.f32.gmra.mrb[0].mxu0 %v190
    %v261 = vpop.f32.mrb[0].mxu0
    %v262 = vadd.f32 %v186, %v261
    %v263 = vpop.f32.mrb[0].mxu0
    %264 = vdwg.mxu0
    %vm265 = vcmask 65536
    %266 = vst.msk [vmem:[#allocation5] sm:$0x1] %vm265, %v262
    // Predicated region
    $region18: #{tpu_custom_call.1} parent=1 // pred_check
      _
    $region19: #{tpu_custom_call.1} parent=1 // pred_check_branch
      %268 = sbr.rel (0) target = $region21
    $region20: #{tpu_custom_call.1} parent=1 // pred_region
      %s270 = ssub.s32 16, 16
      %271 = vsyncadd [#allocation4], %s270
      %s273 = sshll.u32 [#allocation5], 4
      %s274 = int_to_ptr.vmem [resolvable:$true] %s273
      %276 = dma.vmem_to_hbm [thread:$0]  %s274, 16, %s3, [#allocation4]
    $region21: #{tpu_custom_call.1} parent=1 // pred_fallthru
      _
    // Predicated region
    $region22: #{tpu_custom_call.1} parent=1 // pred_check
      _
    $region23: #{tpu_custom_call.1} parent=1 // pred_check_branch
      %278 = sbr.rel (0) target = $region25
    $region24: #{tpu_custom_call.1} parent=1 // pred_region
      %279 = dma.done [#allocation4], 16
    $region25: #{tpu_custom_call.1} parent=1 // pred_fallthru
      _
    %280 = vsyncpa [#allocation3], 1
    %281 = vsyncpa [#allocation4], 1

</llo_original>
